<compile_context>
chip_gen: v7x
topology: tpu7x:2x2x1
jax: 0.10.0
libtpu: 0.0.40
codegen_flags: <defaults>
</compile_context>

<pallas_src>
import functools

import jax
import jax.numpy as jnp
from jax import lax
from jax.experimental import pallas as pl
from jax.experimental.pallas import tpu as pltpu

# Module-consistent sizes: feat_grid is [bs, group_size, 7, 7].
B = 2            # batch
G = 4            # group_size
H = W = 7        # spatial grid
HW = H * W
SOFTMAX_T = 1.0
BN_EPS = 1e-5


# ---------------------------------------------------------------------------
# Kernel: whole forward pass, one invocation, one TensorCore.
#   x      : (B, K)       lane-dense activations, zero-padded to K lanes
#   m_slab : (3, K, K)    folded (conv * BN-scale) matrices, zero-padded
#   c_slab : (3, 1, K)    folded additive rows (conv bias through BN)
#   alphas : (3,)         PReLU alphas (SMEM scalars, num_parameters=1)
#   o      : (B, HW)      softmax attention weights (lane-dense)
# ---------------------------------------------------------------------------
def xcos_attention_kernel(x_ref, m_ref, c_ref, a_ref, o_ref):
    def layer(h, idx):
        # 3x3 same-padding conv + bias + BN == one small MXU matmul + row add
        # (default precision: single bf16 pass, f32 accumulation).
        y = jnp.dot(h, m_ref[idx], preferred_element_type=jnp.float32)
        y = y + c_ref[idx]                       # (1, K) row broadcast
        alpha = a_ref[idx]                       # shared PReLU alpha (SMEM scalar)
        return jnp.where(y >= 0.0, y, alpha * y)

    h = layer(x_ref[...], 0)       # embedding_net: Conv(G->G) + BN + PReLU
    h = layer(h, 1)                # attention[0:3]: Conv(G->G) + BN + PReLU
    att = layer(h, 2)              # attention[3:6]: Conv(G->1) + BN + PReLU

    # Only the first HW lanes of the last layer are valid (rest are zero pads).
    hw = o_ref.shape[-1]
    z = att[:, :hw]
    if SOFTMAX_T != 1.0:           # trace-time constant; no-op for T == 1
        z = z * (1.0 / SOFTMAX_T)

    # Temperature softmax over the flattened spatial axis, per batch row.
    m = jnp.max(z, axis=-1, keepdims=True)
    e = jnp.exp(z - m)
    denom = jnp.sum(e, axis=-1, keepdims=True)
    o_ref[...] = e * pl.reciprocal(denom, approx=True)


# ---------------------------------------------------------------------------
# One-time parameter folding + packing (hoisted out of the per-call path).
# ---------------------------------------------------------------------------
def conv3x3_to_dense(w, Hx, Wx):
    """Fold a 3x3 stride-1 pad-1 conv into a dense (cin*HW, cout*HW) matrix.

    M[ci*HW + q, co*HW + p] = w[co, ci, qy-py+1, qx-px+1] if the tap is in
    bounds, else 0 -- every entry is an exact copy of a conv weight or zero.
    """
    cout, cin, kh, kw = w.shape
    hw = Hx * Wx
    yy, xx = jnp.meshgrid(jnp.arange(Hx), jnp.arange(Wx), indexing="ij")
    py = yy.reshape(-1)
    px = xx.reshape(-1)
    dy = py[:, None] - py[None, :] + (kh // 2)   # rows: input pos q, cols: output pos p
    dx = px[:, None] - px[None, :] + (kw // 2)
    valid = (dy >= 0) & (dy < kh) & (dx >= 0) & (dx < kw)
    wm = w[:, :, jnp.clip(dy, 0, kh - 1), jnp.clip(dx, 0, kw - 1)]   # (cout, cin, hw, hw)
    wm = jnp.where(valid[None, None, :, :], wm, 0.0)
    return jnp.transpose(wm, (1, 2, 0, 3)).reshape(cin * hw, cout * hw)


def prepare_xcos_params(params, Hx=H, Wx=W):
    """Fold conv bias + BN into the dense matrices and pack everything into
    three tile-friendly slabs.  Call ONCE at parameter-load time."""
    (w1, b1, s1, t1, a1,
     w2, b2, s2, t2, a2,
     w3, b3, s3, t3, a3) = params
    hw = Hx * Wx
    cin = w1.shape[1]
    kdim = pl.cdiv(cin * hw, 128) * 128          # lane-aligned contraction width

    def fold(w, b, s, t):
        ci, co = w.shape[1], w.shape[0]
        m = conv3x3_to_dense(w.astype(jnp.float32), Hx, Wx)          # (ci*hw, co*hw)
        m = m * jnp.repeat(s.astype(jnp.float32), hw)[None, :]       # BN scale -> matrix
        c = jnp.repeat((b * s + t).astype(jnp.float32), hw)          # bias through BN
        mp = jnp.zeros((kdim, kdim), jnp.float32).at[: ci * hw, : co * hw].set(m)
        cp = jnp.zeros((1, kdim), jnp.float32).at[0, : co * hw].set(c)
        return mp, cp

    m1, r1 = fold(w1, b1, s1, t1)
    m2, r2 = fold(w2, b2, s2, t2)
    m3, r3 = fold(w3, b3, s3, t3)
    m_slab = jnp.stack([m1, m2, m3])                                  # (3, K, K)
    c_slab = jnp.stack([r1, r2, r3])                                  # (3, 1, K)
    alphas = jnp.stack([a1[0], a2[0], a3[0]]).astype(jnp.float32)     # (3,)
    return m_slab, c_slab, alphas


# ---------------------------------------------------------------------------
# Per-call forward: activation glue + one pallas_call.
# ---------------------------------------------------------------------------
@functools.partial(jax.jit, static_argnames=("chw2hwc",))
def xcos_attention(feat_grid, m_slab, c_slab, alphas, chw2hwc=True):
    Bx, Gx, Hx, Wx = feat_grid.shape
    hw = Hx * Wx
    kdim = m_slab.shape[-1]

    # Lane-dense activations, zero-padded to the contraction width (pure glue).
    x2d = feat_grid.reshape(Bx, Gx * hw).astype(jnp.float32)
    x2d = jnp.pad(x2d, ((0, 0), (0, kdim - Gx * hw)))

    vmem = pl.BlockSpec(memory_space=pltpu.MemorySpace.VMEM)
    smem = pl.BlockSpec(memory_space=pltpu.MemorySpace.SMEM)
    out2d = pl.pallas_call(
        xcos_attention_kernel,
        out_shape=jax.ShapeDtypeStruct((Bx, hw), jnp.float32),
        in_specs=[vmem, vmem, vmem, smem],
        out_specs=vmem,
    )(x2d, m_slab, c_slab, alphas)

    if chw2hwc:
        # NCHW -> NHWC with C=1 is just appending the channel dim (glue).
        return out2d.reshape(Bx, Hx, Wx, 1)
    return out2d.reshape(Bx, 1, Hx, Wx)


# ---------------------------------------------------------------------------
# Deterministic synthetic parameters (no checkpoint loading).
# ---------------------------------------------------------------------------
def init_params(key):
    ks = jax.random.split(key, 12)

    def bn_fold(gamma, beta, mean, var):
        scale = gamma / jnp.sqrt(var + BN_EPS)
        shift = beta - mean * scale
        return scale.astype(jnp.float32), shift.astype(jnp.float32)

    # embedding_net conv: (G, G, 3, 3)
    w1 = (0.1 * jax.random.normal(ks[0], (G, G, 3, 3))).astype(jnp.float32)
    b1 = (0.05 * jax.random.normal(ks[1], (G,))).astype(jnp.float32)
    s1, t1 = bn_fold(1.0 + 0.1 * jax.random.normal(ks[2], (G,)),
                     0.1 * jax.random.normal(ks[3], (G,)),
                     jnp.zeros((G,)), jnp.ones((G,)))
    a1 = jnp.array([0.25], jnp.float32)

    # attention conv #1: (G, G, 3, 3)
    w2 = (0.1 * jax.random.normal(ks[4], (G, G, 3, 3))).astype(jnp.float32)
    b2 = (0.05 * jax.random.normal(ks[5], (G,))).astype(jnp.float32)
    s2, t2 = bn_fold(1.0 + 0.1 * jax.random.normal(ks[6], (G,)),
                     0.1 * jax.random.normal(ks[7], (G,)),
                     jnp.zeros((G,)), jnp.ones((G,)))
    a2 = jnp.array([0.25], jnp.float32)

    # attention conv #2: (1, G, 3, 3)
    w3 = (0.1 * jax.random.normal(ks[8], (1, G, 3, 3))).astype(jnp.float32)
    b3 = (0.05 * jax.random.normal(ks[9], (1,))).astype(jnp.float32)
    s3, t3 = bn_fold(1.0 + 0.1 * jax.random.normal(ks[10], (1,)),
                     0.1 * jax.random.normal(ks[11], (1,)),
                     jnp.zeros((1,)), jnp.ones((1,)))
    a3 = jnp.array([0.25], jnp.float32)

    return (w1, b1, s1, t1, a1,
            w2, b2, s2, t2, a2,
            w3, b3, s3, t3, a3)


# ---------------------------------------------------------------------------
# Pure-JAX reference (independent path: real convs at HIGHEST precision).
# ---------------------------------------------------------------------------
def reference(feat_grid, params, chw2hwc=True):
    (w1, b1, s1, t1, a1,
     w2, b2, s2, t2, a2,
     w3, b3, s3, t3, a3) = params

    def conv(x, w, b):
        y = lax.conv_general_dilated(
            x, w, (1, 1), ((1, 1), (1, 1)),
            dimension_numbers=("NCHW", "OIHW", "NCHW"),
            precision=lax.Precision.HIGHEST)
        return y + b[None, :, None, None]

    def bn_prelu(y, s, t, a):
        y = y * s[None, :, None, None] + t[None, :, None, None]
        return jnp.where(y >= 0, y, a[0] * y)

    emb = bn_prelu(conv(feat_grid, w1, b1), s1, t1, a1)
    hid = bn_prelu(conv(emb, w2, b2), s2, t2, a2)
    att = bn_prelu(conv(hid, w3, b3), s3, t3, a3)
    att = att / SOFTMAX_T
    bsz = att.shape[0]
    sm = jax.nn.softmax(att.reshape(bsz, 1, -1), axis=2).reshape(att.shape)
    if chw2hwc:
        return jnp.transpose(sm, (0, 2, 3, 1))
    return sm


if __name__ == "__main__":
    key = jax.random.PRNGKey(0)
    kx, kp = jax.random.split(key)
    feat_grid = jax.random.normal(kx, (B, G, H, W), dtype=jnp.float32)
    params = init_params(kp)

    # One-time parameter folding/packing (cached; NOT in the per-call path).
    prepared = prepare_xcos_params(params)
    prepared = jax.block_until_ready(prepared)
    m_slab, c_slab, alphas = prepared

    out = xcos_attention(feat_grid, m_slab, c_slab, alphas, chw2hwc=True)
    out = jax.block_until_ready(out)

    assert out.shape == (B, H, W, 1), out.shape

    ref = reference(feat_grid, params, chw2hwc=True)
    if not jnp.allclose(out, ref, atol=1e-3, rtol=1e-3):
        max_err = jnp.max(jnp.abs(out - ref))
        raise AssertionError(
            f"Pallas kernel output mismatches JAX reference (max abs err {max_err})")

    print("KERNEL_OK")
</pallas_src>

<mosaic_0001>
module attributes {stable_mosaic.version = 11 : i64} {
  func.func @xcos_attention_kernel(%arg0: memref<2x256xf32, #tpu.memory_space<vmem>>, %arg1: memref<3x256x256xf32, #tpu.memory_space<vmem>>, %arg2: memref<3x1x256xf32, #tpu.memory_space<vmem>>, %arg3: memref<3xf32, #tpu.memory_space<smem>>, %arg4: memref<2x49xf32, #tpu.memory_space<vmem>>) attributes {dimension_semantics = [], scalar_prefetch = 0 : i64, scratch_operands = 0 : i64, tpu.core_type = #tpu.core_type<tc>} {
    %c0 = arith.constant 0 : index
    %c0_0 = arith.constant 0 : index
    %0 = vector.load %arg0[%c0, %c0_0] : memref<2x256xf32, #tpu.memory_space<vmem>>, vector<2x256xf32>
    %c0_1 = arith.constant 0 : index
    %c0_2 = arith.constant 0 : index
    %c0_3 = arith.constant 0 : index
    %1 = vector.load %arg1[%c0_1, %c0_2, %c0_3] : memref<3x256x256xf32, #tpu.memory_space<vmem>>, vector<1x256x256xf32>
    %2 = vector.shape_cast %1 : vector<1x256x256xf32> to vector<256x256xf32>
    %cst = arith.constant dense<0.000000e+00> : vector<2x256xf32>
    %3 = tpu.matmul %0, %2, %cst {dimension_numbers = #tpu.dot_dimension_numbers<[1], [0], [0], [1], [0, 0, 1, 1], [], []>} : vector<2x256xf32>, vector<256x256xf32>, vector<2x256xf32> -> vector<2x256xf32>
    %c0_4 = arith.constant 0 : index
    %c0_5 = arith.constant 0 : index
    %c0_6 = arith.constant 0 : index
    %4 = vector.load %arg2[%c0_4, %c0_5, %c0_6] : memref<3x1x256xf32, #tpu.memory_space<vmem>>, vector<1x1x256xf32>
    %5 = vector.shape_cast %4 : vector<1x1x256xf32> to vector<1x256xf32>
    %6 = vector.broadcast %5 : vector<1x256xf32> to vector<2x256xf32>
    %7 = arith.addf %3, %6 : vector<2x256xf32>
    %c0_7 = arith.constant 0 : index
    %8 = memref.load %arg3[%c0_7] : memref<3xf32, #tpu.memory_space<smem>>
    %cst_8 = arith.constant 0.000000e+00 : f32
    %9 = vector.broadcast %cst_8 : f32 to vector<2x256xf32>
    %10 = arith.cmpf oge, %7, %9 : vector<2x256xf32>
    %11 = vector.broadcast %8 : f32 to vector<2x256xf32>
    %12 = arith.mulf %11, %7 : vector<2x256xf32>
    %13 = arith.select %10, %7, %12 : vector<2x256xi1>, vector<2x256xf32>
    %c1 = arith.constant 1 : index
    %c0_9 = arith.constant 0 : index
    %c0_10 = arith.constant 0 : index
    %14 = vector.load %arg1[%c1, %c0_9, %c0_10] : memref<3x256x256xf32, #tpu.memory_space<vmem>>, vector<1x256x256xf32>
    %15 = vector.shape_cast %14 : vector<1x256x256xf32> to vector<256x256xf32>
    %cst_11 = arith.constant dense<0.000000e+00> : vector<2x256xf32>
    %16 = tpu.matmul %13, %15, %cst_11 {dimension_numbers = #tpu.dot_dimension_numbers<[1], [0], [0], [1], [0, 0, 1, 1], [], []>} : vector<2x256xf32>, vector<256x256xf32>, vector<2x256xf32> -> vector<2x256xf32>
    %c1_12 = arith.constant 1 : index
    %c0_13 = arith.constant 0 : index
    %c0_14 = arith.constant 0 : index
    %17 = vector.load %arg2[%c1_12, %c0_13, %c0_14] : memref<3x1x256xf32, #tpu.memory_space<vmem>>, vector<1x1x256xf32>
    %18 = vector.shape_cast %17 : vector<1x1x256xf32> to vector<1x256xf32>
    %19 = vector.broadcast %18 : vector<1x256xf32> to vector<2x256xf32>
    %20 = arith.addf %16, %19 : vector<2x256xf32>
    %c1_15 = arith.constant 1 : index
    %21 = memref.load %arg3[%c1_15] : memref<3xf32, #tpu.memory_space<smem>>
    %cst_16 = arith.constant 0.000000e+00 : f32
    %22 = vector.broadcast %cst_16 : f32 to vector<2x256xf32>
    %23 = arith.cmpf oge, %20, %22 : vector<2x256xf32>
    %24 = vector.broadcast %21 : f32 to vector<2x256xf32>
    %25 = arith.mulf %24, %20 : vector<2x256xf32>
    %26 = arith.select %23, %20, %25 : vector<2x256xi1>, vector<2x256xf32>
    %c2 = arith.constant 2 : index
    %c0_17 = arith.constant 0 : index
    %c0_18 = arith.constant 0 : index
    %27 = vector.load %arg1[%c2, %c0_17, %c0_18] : memref<3x256x256xf32, #tpu.memory_space<vmem>>, vector<1x256x256xf32>
    %28 = vector.shape_cast %27 : vector<1x256x256xf32> to vector<256x256xf32>
    %cst_19 = arith.constant dense<0.000000e+00> : vector<2x256xf32>
    %29 = tpu.matmul %26, %28, %cst_19 {dimension_numbers = #tpu.dot_dimension_numbers<[1], [0], [0], [1], [0, 0, 1, 1], [], []>} : vector<2x256xf32>, vector<256x256xf32>, vector<2x256xf32> -> vector<2x256xf32>
    %c2_20 = arith.constant 2 : index
    %c0_21 = arith.constant 0 : index
    %c0_22 = arith.constant 0 : index
    %30 = vector.load %arg2[%c2_20, %c0_21, %c0_22] : memref<3x1x256xf32, #tpu.memory_space<vmem>>, vector<1x1x256xf32>
    %31 = vector.shape_cast %30 : vector<1x1x256xf32> to vector<1x256xf32>
    %32 = vector.broadcast %31 : vector<1x256xf32> to vector<2x256xf32>
    %33 = arith.addf %29, %32 : vector<2x256xf32>
    %c2_23 = arith.constant 2 : index
    %34 = memref.load %arg3[%c2_23] : memref<3xf32, #tpu.memory_space<smem>>
    %cst_24 = arith.constant 0.000000e+00 : f32
    %35 = vector.broadcast %cst_24 : f32 to vector<2x256xf32>
    %36 = arith.cmpf oge, %33, %35 : vector<2x256xf32>
    %37 = vector.broadcast %34 : f32 to vector<2x256xf32>
    %38 = arith.mulf %37, %33 : vector<2x256xf32>
    %39 = arith.select %36, %33, %38 : vector<2x256xi1>, vector<2x256xf32>
    %40 = vector.extract_strided_slice %39 {offsets = [0, 0], sizes = [2, 49], strides = [1, 1]} : vector<2x256xf32> to vector<2x49xf32>
    %cst_25 = arith.constant dense<0xFF800000> : vector<2xf32>
    %41 = vector.multi_reduction <maximumf>, %40, %cst_25 [1] : vector<2x49xf32> to vector<2xf32>
    %42 = vector.shape_cast %41 : vector<2xf32> to vector<2x1xf32>
    %43 = vector.broadcast %42 : vector<2x1xf32> to vector<2x49xf32>
    %44 = arith.subf %40, %43 : vector<2x49xf32>
    %45 = math.exp %44 : vector<2x49xf32>
    %cst_26 = arith.constant dense<0.000000e+00> : vector<2xf32>
    %46 = vector.multi_reduction <add>, %45, %cst_26 [1] : vector<2x49xf32> to vector<2xf32>
    %47 = vector.shape_cast %46 : vector<2xf32> to vector<2x1xf32>
    %48 = tpu.reciprocal %47 {approx = true} : vector<2x1xf32> -> vector<2x1xf32>
    %49 = vector.broadcast %48 : vector<2x1xf32> to vector<2x49xf32>
    %50 = arith.mulf %45, %49 : vector<2x49xf32>
    %c0_27 = arith.constant 0 : index
    %c0_28 = arith.constant 0 : index
    %51 = vector.load %arg4[%c0_27, %c0_28] : memref<2x49xf32, #tpu.memory_space<vmem>>, vector<2x49xf32>
    tpu.vector_store %arg4[%c0_27, %c0_28], %50 {strides = array<i32>} : memref<2x49xf32, #tpu.memory_space<vmem>>, vector<2x49xf32>,
    return
  }
}

</mosaic_0001>

<llo_original>
// kernel: xcos_attention.1
$region0: #{xcos_attention.1}
  #allocation0 [shape = 'u32[]', space=smem, size = 0x4, offset = 0x4, fixed_abs, tag = 'smem constant byte address 0x4 - core index']
  #allocation1 [shape = 'u32[144,128]{1,0:T(1,128)}', space=vmem, size = 0x12000, scoped, tag = 'internal scratch']
  %s0 = inlined_call_operand.vmem [shape: f32[2,256], index: 0, kind: input, shape index: {}]
  %s1 = inlined_call_operand.hbm [shape: f32[3,256,256], index: 1, kind: input, shape index: {}]
  %s2 = inlined_call_operand.vmem [shape: f32[3,1,256], index: 2, kind: input, shape index: {}]
  %s3 = inlined_call_operand.vmem [shape: f32[3], index: 3, kind: input, shape index: {}]
  %s4 = inlined_call_operand.vmem [shape: f32[2,49], index: 4, kind: output, shape index: {}]
  %s5 = sld [smem:[#allocation0]]
  $region34: #{xcos_attention.1} parent=0
    _
  %s7 = ssub.s32 1, %s5
  %s8 = scalar_select 0, %s7, %s5
  $region1: #{xcos_attention.1} parent=0
    #allocation2 [shape = 'u8[786432]{0}', space=vmem, size = 0xc0000, scoped, tag = 'input window, operand 1, single buffered']
    #allocation3 [shape = 's32[1]{0}', space=sflag, size = 0x4, scoped, tag = 'scoped memory for xcos_attention.1']
    #allocation4 [shape = 's32[1]{0}', space=sflag, size = 0x4, scoped, tag = 'scoped memory for xcos_attention.1']
    #allocation5 [shape = 'u8[512]{0}', space=smem, size = 0x200, scoped, tag = 'input window, operand 3, single buffered']
    %9 = vsyncpa [#allocation3], 0
    %10 = vsyncpa [#allocation4], 0
    // Predicated region
    $region2: #{xcos_attention.1} parent=1 // pred_check
      _
    $region3: #{xcos_attention.1} parent=1 // pred_check_branch
      %12 = sbr.rel (0) target = $region5
    $region4: #{xcos_attention.1} parent=1 // pred_region
      _
    $region5: #{xcos_attention.1} parent=1 // pred_fallthru
      _
    // Predicated region
    $region6: #{xcos_attention.1} parent=1 // pred_check
      _
    $region7: #{xcos_attention.1} parent=1 // pred_check_branch
      %14 = sbr.rel (0) target = $region9
    $region8: #{xcos_attention.1} parent=1 // pred_region
      %s16 = ssub.s32 24576, 24576
      %17 = vsyncadd [#allocation3], %s16
      %s18 = sshll.u32 [#allocation2], 4
      %s19 = int_to_ptr.vmem [resolvable:$true] %s18
      %24 = dma.hbm_to_vmem [thread:$0]  %s1, 24576, %s19, [#allocation3], 256, 256, 16
    $region9: #{xcos_attention.1} parent=1 // pred_fallthru
      _
    // Predicated region
    $region10: #{xcos_attention.1} parent=1 // pred_check
      _
    $region11: #{xcos_attention.1} parent=1 // pred_check_branch
      %26 = sbr.rel (0) target = $region13
    $region12: #{xcos_attention.1} parent=1 // pred_region
      _
    $region13: #{xcos_attention.1} parent=1 // pred_fallthru
      _
    // Predicated region
    $region14: #{xcos_attention.1} parent=1 // pred_check
      _
    $region15: #{xcos_attention.1} parent=1 // pred_check_branch
      %28 = sbr.rel (0) target = $region17
    $region16: #{xcos_attention.1} parent=1 // pred_region
      %s30 = ssub.s32 16, 16
      %31 = vsyncadd [#allocation4], %s30
      %s33 = sshll.u32 %s3, 4
      %s34 = int_to_ptr.vmem [resolvable:$true] %s33
      %36 = dma.vmem_to_smem %s34, 16, [#allocation5], [#allocation4]
    $region17: #{xcos_attention.1} parent=1 // pred_fallthru
      _
    // Predicated region
    $region18: #{xcos_attention.1} parent=1 // pred_check
      _
    $region19: #{xcos_attention.1} parent=1 // pred_check_branch
      %38 = sbr.rel (0) target = $region21
    $region20: #{xcos_attention.1} parent=1 // pred_region
      %39 = dma.done [#allocation3], 24576
    $region21: #{xcos_attention.1} parent=1 // pred_fallthru
      _
    // Predicated region
    $region22: #{xcos_attention.1} parent=1 // pred_check
      _
    $region23: #{xcos_attention.1} parent=1 // pred_check_branch
      %41 = sbr.rel (0) target = $region25
    $region24: #{xcos_attention.1} parent=1 // pred_region
      %42 = dma.done [#allocation4], 16
    $region25: #{xcos_attention.1} parent=1 // pred_fallthru
      _
    %43 = sfence
    %v44 = vld [vmem:[%s0] sm:$0xf]
    %v45 = vld [vmem:[#allocation2] sm:$0xff]
    %v46 = vld [vmem:[#allocation2 + $0x8] sm:$0xff]
    %v47 = vld [vmem:[#allocation2 + $0x10] sm:$0xff]
    %v48 = vld [vmem:[#allocation2 + $0x18] sm:$0xff]
    %v49 = vld [vmem:[#allocation2 + $0x20] sm:$0xff]
    %v50 = vld [vmem:[#allocation2 + $0x28] sm:$0xff]
    %v51 = vld [vmem:[#allocation2 + $0x30] sm:$0xff]
    %v52 = vld [vmem:[#allocation2 + $0x38] sm:$0xff]
    %v53 = vld [vmem:[#allocation2 + $0x40] sm:$0xff]
    %v54 = vld [vmem:[#allocation2 + $0x48] sm:$0xff]
    %v55 = vld [vmem:[#allocation2 + $0x50] sm:$0xff]
    %v56 = vld [vmem:[#allocation2 + $0x58] sm:$0xff]
    %v57 = vld [vmem:[#allocation2 + $0x60] sm:$0xff]
    %v58 = vld [vmem:[#allocation2 + $0x68] sm:$0xff]
    %v59 = vld [vmem:[#allocation2 + $0x70] sm:$0xff]
    %v60 = vld [vmem:[#allocation2 + $0x78] sm:$0xff]
    %v61 = vld [vmem:[#allocation2 + $0x80] sm:$0xff]
    %v62 = vld [vmem:[#allocation2 + $0x88] sm:$0xff]
    %v63 = vld [vmem:[#allocation2 + $0x90] sm:$0xff]
    %v64 = vld [vmem:[#allocation2 + $0x98] sm:$0xff]
    %v65 = vld [vmem:[#allocation2 + $0xa0] sm:$0xff]
    %v66 = vld [vmem:[#allocation2 + $0xa8] sm:$0xff]
    %v67 = vld [vmem:[#allocation2 + $0xb0] sm:$0xff]
    %v68 = vld [vmem:[#allocation2 + $0xb8] sm:$0xff]
    %v69 = vld [vmem:[#allocation2 + $0xc0] sm:$0xff]
    %v70 = vld [vmem:[#allocation2 + $0xc8] sm:$0xff]
    %v71 = vld [vmem:[#allocation2 + $0xd0] sm:$0xff]
    %v72 = vld [vmem:[#allocation2 + $0xd8] sm:$0xff]
    %v73 = vld [vmem:[#allocation2 + $0xe0] sm:$0xff]
    %v74 = vld [vmem:[#allocation2 + $0xe8] sm:$0xff]
    %v75 = vld [vmem:[#allocation2 + $0xf0] sm:$0xff]
    %v76 = vld [vmem:[#allocation2 + $0xf8] sm:$0xff]
    %v77 = vld [vmem:[#allocation2 + $0x100] sm:$0xff]
    %v78 = vld [vmem:[#allocation2 + $0x108] sm:$0xff]
    %v79 = vld [vmem:[#allocation2 + $0x110] sm:$0xff]
    %v80 = vld [vmem:[#allocation2 + $0x118] sm:$0xff]
    %v81 = vld [vmem:[#allocation2 + $0x120] sm:$0xff]
    %v82 = vld [vmem:[#allocation2 + $0x128] sm:$0xff]
    %v83 = vld [vmem:[#allocation2 + $0x130] sm:$0xff]
    %v84 = vld [vmem:[#allocation2 + $0x138] sm:$0xff]
    %v85 = vld [vmem:[#allocation2 + $0x140] sm:$0xff]
    %v86 = vld [vmem:[#allocation2 + $0x148] sm:$0xff]
    %v87 = vld [vmem:[#allocation2 + $0x150] sm:$0xff]
    %v88 = vld [vmem:[#allocation2 + $0x158] sm:$0xff]
    %v89 = vld [vmem:[#allocation2 + $0x160] sm:$0xff]
    %v90 = vld [vmem:[#allocation2 + $0x168] sm:$0xff]
    %v91 = vld [vmem:[#allocation2 + $0x170] sm:$0xff]
    %v92 = vld [vmem:[#allocation2 + $0x178] sm:$0xff]
    %v93 = vld [vmem:[#allocation2 + $0x180] sm:$0xff]
    %v94 = vld [vmem:[#allocation2 + $0x188] sm:$0xff]
    %v95 = vld [vmem:[#allocation2 + $0x190] sm:$0xff]
    %v96 = vld [vmem:[#allocation2 + $0x198] sm:$0xff]
    %v97 = vld [vmem:[#allocation2 + $0x1a0] sm:$0xff]
    %v98 = vld [vmem:[#allocation2 + $0x1a8] sm:$0xff]
    %v99 = vld [vmem:[#allocation2 + $0x1b0] sm:$0xff]
    %v100 = vld [vmem:[#allocation2 + $0x1b8] sm:$0xff]
    %v101 = vld [vmem:[#allocation2 + $0x1c0] sm:$0xff]
    %v102 = vld [vmem:[#allocation2 + $0x1c8] sm:$0xff]
    %v103 = vld [vmem:[#allocation2 + $0x1d0] sm:$0xff]
    %v104 = vld [vmem:[#allocation2 + $0x1d8] sm:$0xff]
    %v105 = vld [vmem:[#allocation2 + $0x1e0] sm:$0xff]
    %v106 = vld [vmem:[#allocation2 + $0x1e8] sm:$0xff]
    %v107 = vld [vmem:[#allocation2 + $0x1f0] sm:$0xff]
    %v108 = vld [vmem:[#allocation2 + $0x1f8] sm:$0xff]
    %v109 = vld [vmem:[%s2] sm:$0x3]
    %v111 = vlaneseq
    %v112 = vshrl.u32 %v111, 7
    %v113 = vsub.s32 0, %v112
    %v114 = vrot.slane %v109, %v113
    %v115 = vlaneseq
    %v116 = vshrl.u32 %v115, 7
    %v117 = vsub.s32 1, %v116
    %v118 = vrot.slane %v109, %v117
    %v123 = vunpack.c.l.s4 1983009808
    %v124 = vunpack.c.0.s8 %v123
    %v125 = vlaneseq
    %v126 = vshrl.u32 %v125, 7
    %v127 = vsub.s32 %v124, %v126
    %v128 = vrot.slane %v44, %v127
    %v129 = vcombine.high %v128, %v128
    %132 = vmatprep.subr.mxu0 %v46
    %133 = vmatpush1.msra.mxu0 %v45
    %134 = vmatprep.subr.mxu0 %v48
    %135 = vmatpush1.msra.mxu0 %v47
    %136 = vmatprep.subr.mxu0 %v50
    %137 = vmatpush1.msra.mxu0 %v49
    %138 = vmatprep.subr.mxu0 %v52
    %139 = vmatpush1.msra.mxu0 %v51
    %140 = vmatprep.subr.mxu0 %v54
    %141 = vmatpush1.msra.mxu0 %v53
    %142 = vmatprep.subr.mxu0 %v56
    %143 = vmatpush1.msra.mxu0 %v55
    %144 = vmatprep.subr.mxu0 %v58
    %145 = vmatpush1.msra.mxu0 %v57
    %146 = vmatprep.subr.mxu0 %v60
    %147 = vmatpush1.msra.mxu0 %v59
    %148 = vmatprep.subr.mxu0 %v62
    %149 = vmatpush1.msra.mxu0 %v61
    %150 = vmatprep.subr.mxu0 %v64
    %151 = vmatpush1.msra.mxu0 %v63
    %152 = vmatprep.subr.mxu0 %v66
    %153 = vmatpush1.msra.mxu0 %v65
    %154 = vmatprep.subr.mxu0 %v68
    %155 = vmatpush1.msra.mxu0 %v67
    %156 = vmatprep.subr.mxu0 %v70
    %157 = vmatpush1.msra.mxu0 %v69
    %158 = vmatprep.subr.mxu0 %v72
    %159 = vmatpush1.msra.mxu0 %v71
    %160 = vmatprep.subr.mxu0 %v74
    %161 = vmatpush1.msra.mxu0 %v73
    %162 = vmatprep.subr.mxu0 %v76
    %163 = vmatpush1.msra.mxu0 %v75
    %164 = vmatprep.subr.mxu0 %v78
    %165 = vmatpush1.msra.mxu0 %v77
    %166 = vmatprep.subr.mxu0 %v80
    %167 = vmatpush1.msra.mxu0 %v79
    %168 = vmatprep.subr.mxu0 %v82
    %169 = vmatpush1.msra.mxu0 %v81
    %170 = vmatprep.subr.mxu0 %v84
    %171 = vmatpush1.msra.mxu0 %v83
    %172 = vmatprep.subr.mxu0 %v86
    %173 = vmatpush1.msra.mxu0 %v85
    %174 = vmatprep.subr.mxu0 %v88
    %175 = vmatpush1.msra.mxu0 %v87
    %176 = vmatprep.subr.mxu0 %v90
    %177 = vmatpush1.msra.mxu0 %v89
    %178 = vmatprep.subr.mxu0 %v92
    %179 = vmatpush1.msra.mxu0 %v91
    %180 = vmatprep.subr.mxu0 %v94
    %181 = vmatpush1.msra.mxu0 %v93
    %182 = vmatprep.subr.mxu0 %v96
    %183 = vmatpush1.msra.mxu0 %v95
    %184 = vmatprep.subr.mxu0 %v98
    %185 = vmatpush1.msra.mxu0 %v97
    %186 = vmatprep.subr.mxu0 %v100
    %187 = vmatpush1.msra.mxu0 %v99
    %188 = vmatprep.subr.mxu0 %v102
    %189 = vmatpush1.msra.mxu0 %v101
    %190 = vmatprep.subr.mxu0 %v104
    %191 = vmatpush1.msra.mxu0 %v103
    %192 = vmatprep.subr.mxu0 %v106
    %193 = vmatpush1.msra.mxu0 %v105
    %194 = vmatprep.subr.mxu0 %v108
    %195 = vmatpush1.msra.mxu0 %v107
    %196 = vmatprep.mubr.f32.mxu0 %v129
    %197 = vmatmul.mubr.f32.gmra.mrb[0].mxu0 %v128
    %v198 = vpop.f32.mrb[0].mxu0
    %v199 = vadd.f32 %v114, %v198
    %v200 = vpop.f32.mrb[0].mxu0
    %v201 = vadd.f32 %v118, %v200
    %202 = vdwg.mxu0
    %s203 = sld [smem:[#allocation5]]
    %vm204 = vcmp.ge.f32.partialorder %v199, 0.0
    %vm205 = vcmp.ge.f32.partialorder %v201, 0.0
    %v206 = vstv %s203
    %v207 = vmul.f32 %v206, %v199
    %v208 = vmul.f32 %v206, %v201
    %v209 = vsel %vm204, %v199, %v207
    %v210 = vsel %vm205, %v201, %v208
    %s211 = scalar_lea.vmem [#allocation2], 512
    %v212 = vld [vmem:[%s211] sm:$0xff]
    %v213 = vld [vmem:[%s211 + $0x8] sm:$0xff]
    %v214 = vld [vmem:[%s211 + $0x10] sm:$0xff]
    %v215 = vld [vmem:[%s211 + $0x18] sm:$0xff]
    %v216 = vld [vmem:[%s211 + $0x20] sm:$0xff]
    %v217 = vld [vmem:[%s211 + $0x28] sm:$0xff]
    %v218 = vld [vmem:[%s211 + $0x30] sm:$0xff]
    %v219 = vld [vmem:[%s211 + $0x38] sm:$0xff]
    %v220 = vld [vmem:[%s211 + $0x40] sm:$0xff]
    %v221 = vld [vmem:[%s211 + $0x48] sm:$0xff]
    %v222 = vld [vmem:[%s211 + $0x50] sm:$0xff]
    %v223 = vld [vmem:[%s211 + $0x58] sm:$0xff]
    %v224 = vld [vmem:[%s211 + $0x60] sm:$0xff]
    %v225 = vld [vmem:[%s211 + $0x68] sm:$0xff]
    %v226 = vld [vmem:[%s211 + $0x70] sm:$0xff]
    %v227 = vld [vmem:[%s211 + $0x78] sm:$0xff]
    %v228 = vld [vmem:[%s211 + $0x80] sm:$0xff]
    %v229 = vld [vmem:[%s211 + $0x88] sm:$0xff]
    %v230 = vld [vmem:[%s211 + $0x90] sm:$0xff]
    %v231 = vld [vmem:[%s211 + $0x98] sm:$0xff]
    %v232 = vld [vmem:[%s211 + $0xa0] sm:$0xff]
    %v233 = vld [vmem:[%s211 + $0xa8] sm:$0xff]
    %v234 = vld [vmem:[%s211 + $0xb0] sm:$0xff]
    %v235 = vld [vmem:[%s211 + $0xb8] sm:$0xff]
    %v236 = vld [vmem:[%s211 + $0xc0] sm:$0xff]
    %v237 = vld [vmem:[%s211 + $0xc8] sm:$0xff]
    %v238 = vld [vmem:[%s211 + $0xd0] sm:$0xff]
    %v239 = vld [vmem:[%s211 + $0xd8] sm:$0xff]
    %v240 = vld [vmem:[%s211 + $0xe0] sm:$0xff]
    %v241 = vld [vmem:[%s211 + $0xe8] sm:$0xff]
    %v242 = vld [vmem:[%s211 + $0xf0] sm:$0xff]
    %v243 = vld [vmem:[%s211 + $0xf8] sm:$0xff]
    %v244 = vld [vmem:[%s211 + $0x100] sm:$0xff]
    %v245 = vld [vmem:[%s211 + $0x108] sm:$0xff]
    %v246 = vld [vmem:[%s211 + $0x110] sm:$0xff]
    %v247 = vld [vmem:[%s211 + $0x118] sm:$0xff]
    %v248 = vld [vmem:[%s211 + $0x120] sm:$0xff]
    %v249 = vld [vmem:[%s211 + $0x128] sm:$0xff]
    %v250 = vld [vmem:[%s211 + $0x130] sm:$0xff]
    %v251 = vld [vmem:[%s211 + $0x138] sm:$0xff]
    %v252 = vld [vmem:[%s211 + $0x140] sm:$0xff]
    %v253 = vld [vmem:[%s211 + $0x148] sm:$0xff]
    %v254 = vld [vmem:[%s211 + $0x150] sm:$0xff]
    %v255 = vld [vmem:[%s211 + $0x158] sm:$0xff]
    %v256 = vld [vmem:[%s211 + $0x160] sm:$0xff]
    %v257 = vld [vmem:[%s211 + $0x168] sm:$0xff]
    %v258 = vld [vmem:[%s211 + $0x170] sm:$0xff]
    %v259 = vld [vmem:[%s211 + $0x178] sm:$0xff]
    %v260 = vld [vmem:[%s211 + $0x180] sm:$0xff]
    %v261 = vld [vmem:[%s211 + $0x188] sm:$0xff]
    %v262 = vld [vmem:[%s211 + $0x190] sm:$0xff]
    %v263 = vld [vmem:[%s211 + $0x198] sm:$0xff]
    %v264 = vld [vmem:[%s211 + $0x1a0] sm:$0xff]
    %v265 = vld [vmem:[%s211 + $0x1a8] sm:$0xff]
    %v266 = vld [vmem:[%s211 + $0x1b0] sm:$0xff]
    %v267 = vld [vmem:[%s211 + $0x1b8] sm:$0xff]
    %v268 = vld [vmem:[%s211 + $0x1c0] sm:$0xff]
    %v269 = vld [vmem:[%s211 + $0x1c8] sm:$0xff]
    %v270 = vld [vmem:[%s211 + $0x1d0] sm:$0xff]
    %v271 = vld [vmem:[%s211 + $0x1d8] sm:$0xff]
    %v272 = vld [vmem:[%s211 + $0x1e0] sm:$0xff]
    %v273 = vld [vmem:[%s211 + $0x1e8] sm:$0xff]
    %v274 = vld [vmem:[%s211 + $0x1f0] sm:$0xff]
    %v275 = vld [vmem:[%s211 + $0x1f8] sm:$0xff]
    %s276 = scalar_lea.vmem %s2, 2
    %v277 = vld [vmem:[%s276] sm:$0x3]
    %v279 = vlaneseq
    %v280 = vshrl.u32 %v279, 7
    %v281 = vsub.s32 0, %v280
    %v282 = vrot.slane %v277, %v281
    %v283 = vlaneseq
    %v284 = vshrl.u32 %v283, 7
    %v285 = vsub.s32 1, %v284
    %v286 = vrot.slane %v277, %v285
    %289 = vmatprep.subr.mxu0 %v213
    %290 = vmatpush1.msra.mxu0 %v212
    %291 = vmatprep.subr.mxu0 %v215
    %292 = vmatpush1.msra.mxu0 %v214
    %293 = vmatprep.subr.mxu0 %v217
    %294 = vmatpush1.msra.mxu0 %v216
    %295 = vmatprep.subr.mxu0 %v219
    %296 = vmatpush1.msra.mxu0 %v218
    %297 = vmatprep.subr.mxu0 %v221
    %298 = vmatpush1.msra.mxu0 %v220
    %299 = vmatprep.subr.mxu0 %v223
    %300 = vmatpush1.msra.mxu0 %v222
    %301 = vmatprep.subr.mxu0 %v225
    %302 = vmatpush1.msra.mxu0 %v224
    %303 = vmatprep.subr.mxu0 %v227
    %304 = vmatpush1.msra.mxu0 %v226
    %305 = vmatprep.subr.mxu0 %v229
    %306 = vmatpush1.msra.mxu0 %v228
    %307 = vmatprep.subr.mxu0 %v231
    %308 = vmatpush1.msra.mxu0 %v230
    %309 = vmatprep.subr.mxu0 %v233
    %310 = vmatpush1.msra.mxu0 %v232
    %311 = vmatprep.subr.mxu0 %v235
    %312 = vmatpush1.msra.mxu0 %v234
    %313 = vmatprep.subr.mxu0 %v237
    %314 = vmatpush1.msra.mxu0 %v236
    %315 = vmatprep.subr.mxu0 %v239
    %316 = vmatpush1.msra.mxu0 %v238
    %317 = vmatprep.subr.mxu0 %v241
    %318 = vmatpush1.msra.mxu0 %v240
    %319 = vmatprep.subr.mxu0 %v243
    %320 = vmatpush1.msra.mxu0 %v242
    %321 = vmatprep.subr.mxu0 %v245
    %322 = vmatpush1.msra.mxu0 %v244
    %323 = vmatprep.subr.mxu0 %v247
    %324 = vmatpush1.msra.mxu0 %v246
    %325 = vmatprep.subr.mxu0 %v249
    %326 = vmatpush1.msra.mxu0 %v248
    %327 = vmatprep.subr.mxu0 %v251
    %328 = vmatpush1.msra.mxu0 %v250
    %329 = vmatprep.subr.mxu0 %v253
    %330 = vmatpush1.msra.mxu0 %v252
    %331 = vmatprep.subr.mxu0 %v255
    %332 = vmatpush1.msra.mxu0 %v254
    %333 = vmatprep.subr.mxu0 %v257
    %334 = vmatpush1.msra.mxu0 %v256
    %335 = vmatprep.subr.mxu0 %v259
    %336 = vmatpush1.msra.mxu0 %v258
    %337 = vmatprep.subr.mxu0 %v261
    %338 = vmatpush1.msra.mxu0 %v260
    %339 = vmatprep.subr.mxu0 %v263
    %340 = vmatpush1.msra.mxu0 %v262
    %341 = vmatprep.subr.mxu0 %v265
    %342 = vmatpush1.msra.mxu0 %v264
    %343 = vmatprep.subr.mxu0 %v267
    %344 = vmatpush1.msra.mxu0 %v266
    %345 = vmatprep.subr.mxu0 %v269
    %346 = vmatpush1.msra.mxu0 %v268
    %347 = vmatprep.subr.mxu0 %v271
    %348 = vmatpush1.msra.mxu0 %v270
    %349 = vmatprep.subr.mxu0 %v273
    %350 = vmatpush1.msra.mxu0 %v272
    %351 = vmatprep.subr.mxu0 %v275
    %352 = vmatpush1.msra.mxu0 %v274
    %353 = vmatprep.mubr.f32.mxu0 %v210
    %354 = vmatmul.mubr.f32.gmra.mrb[0].mxu0 %v209
    %v355 = vpop.f32.mrb[0].mxu0
    %v356 = vadd.f32 %v282, %v355
    %v357 = vpop.f32.mrb[0].mxu0
    %v358 = vadd.f32 %v286, %v357
    %359 = vdwg.mxu0
    %s360 = sld [smem:[#allocation5 + $0x1]]
    %vm361 = vcmp.ge.f32.partialorder %v356, 0.0
    %vm362 = vcmp.ge.f32.partialorder %v358, 0.0
    %v363 = vstv %s360
    %v364 = vmul.f32 %v363, %v356
    %v365 = vmul.f32 %v363, %v358
    %v366 = vsel %vm361, %v356, %v364
    %v367 = vsel %vm362, %v358, %v365
    %s368 = scalar_lea.vmem [#allocation2], 1024
    %v369 = vld [vmem:[%s368] sm:$0xff]
    %v370 = vld [vmem:[%s368 + $0x8] sm:$0xff]
    %v371 = vld [vmem:[%s368 + $0x10] sm:$0xff]
    %v372 = vld [vmem:[%s368 + $0x18] sm:$0xff]
    %v373 = vld [vmem:[%s368 + $0x20] sm:$0xff]
    %v374 = vld [vmem:[%s368 + $0x28] sm:$0xff]
    %v375 = vld [vmem:[%s368 + $0x30] sm:$0xff]
    %v376 = vld [vmem:[%s368 + $0x38] sm:$0xff]
    %v377 = vld [vmem:[%s368 + $0x40] sm:$0xff]
    %v378 = vld [vmem:[%s368 + $0x48] sm:$0xff]
    %v379 = vld [vmem:[%s368 + $0x50] sm:$0xff]
    %v380 = vld [vmem:[%s368 + $0x58] sm:$0xff]
    %v381 = vld [vmem:[%s368 + $0x60] sm:$0xff]
    %v382 = vld [vmem:[%s368 + $0x68] sm:$0xff]
    %v383 = vld [vmem:[%s368 + $0x70] sm:$0xff]
    %v384 = vld [vmem:[%s368 + $0x78] sm:$0xff]
    %v385 = vld [vmem:[%s368 + $0x80] sm:$0xff]
    %v386 = vld [vmem:[%s368 + $0x88] sm:$0xff]
    %v387 = vld [vmem:[%s368 + $0x90] sm:$0xff]
    %v388 = vld [vmem:[%s368 + $0x98] sm:$0xff]
    %v389 = vld [vmem:[%s368 + $0xa0] sm:$0xff]
    %v390 = vld [vmem:[%s368 + $0xa8] sm:$0xff]
    %v391 = vld [vmem:[%s368 + $0xb0] sm:$0xff]
    %v392 = vld [vmem:[%s368 + $0xb8] sm:$0xff]
    %v393 = vld [vmem:[%s368 + $0xc0] sm:$0xff]
    %v394 = vld [vmem:[%s368 + $0xc8] sm:$0xff]
    %v395 = vld [vmem:[%s368 + $0xd0] sm:$0xff]
    %v396 = vld [vmem:[%s368 + $0xd8] sm:$0xff]
    %v397 = vld [vmem:[%s368 + $0xe0] sm:$0xff]
    %v398 = vld [vmem:[%s368 + $0xe8] sm:$0xff]
    %v399 = vld [vmem:[%s368 + $0xf0] sm:$0xff]
    %v400 = vld [vmem:[%s368 + $0xf8] sm:$0xff]
    %v401 = vld [vmem:[%s368 + $0x100] sm:$0xff]
    %v402 = vld [vmem:[%s368 + $0x108] sm:$0xff]
    %v403 = vld [vmem:[%s368 + $0x110] sm:$0xff]
    %v404 = vld [vmem:[%s368 + $0x118] sm:$0xff]
    %v405 = vld [vmem:[%s368 + $0x120] sm:$0xff]
    %v406 = vld [vmem:[%s368 + $0x128] sm:$0xff]
    %v407 = vld [vmem:[%s368 + $0x130] sm:$0xff]
    %v408 = vld [vmem:[%s368 + $0x138] sm:$0xff]
    %v409 = vld [vmem:[%s368 + $0x140] sm:$0xff]
    %v410 = vld [vmem:[%s368 + $0x148] sm:$0xff]
    %v411 = vld [vmem:[%s368 + $0x150] sm:$0xff]
    %v412 = vld [vmem:[%s368 + $0x158] sm:$0xff]
    %v413 = vld [vmem:[%s368 + $0x160] sm:$0xff]
    %v414 = vld [vmem:[%s368 + $0x168] sm:$0xff]
    %v415 = vld [vmem:[%s368 + $0x170] sm:$0xff]
    %v416 = vld [vmem:[%s368 + $0x178] sm:$0xff]
    %v417 = vld [vmem:[%s368 + $0x180] sm:$0xff]
    %v418 = vld [vmem:[%s368 + $0x188] sm:$0xff]
    %v419 = vld [vmem:[%s368 + $0x190] sm:$0xff]
    %v420 = vld [vmem:[%s368 + $0x198] sm:$0xff]
    %v421 = vld [vmem:[%s368 + $0x1a0] sm:$0xff]
    %v422 = vld [vmem:[%s368 + $0x1a8] sm:$0xff]
    %v423 = vld [vmem:[%s368 + $0x1b0] sm:$0xff]
    %v424 = vld [vmem:[%s368 + $0x1b8] sm:$0xff]
    %v425 = vld [vmem:[%s368 + $0x1c0] sm:$0xff]
    %v426 = vld [vmem:[%s368 + $0x1c8] sm:$0xff]
    %v427 = vld [vmem:[%s368 + $0x1d0] sm:$0xff]
    %v428 = vld [vmem:[%s368 + $0x1d8] sm:$0xff]
    %v429 = vld [vmem:[%s368 + $0x1e0] sm:$0xff]
    %v430 = vld [vmem:[%s368 + $0x1e8] sm:$0xff]
    %v431 = vld [vmem:[%s368 + $0x1f0] sm:$0xff]
    %v432 = vld [vmem:[%s368 + $0x1f8] sm:$0xff]
    %s433 = scalar_lea.vmem %s2, 4
    %v434 = vld [vmem:[%s433] sm:$0x3]
    %v436 = vlaneseq
    %v437 = vshrl.u32 %v436, 7
    %v438 = vsub.s32 0, %v437
    %v439 = vrot.slane %v434, %v438
    %441 = vmatprep.subr.mxu0 %v370
    %442 = vmatpush1.msra.mxu0 %v369
    %443 = vmatprep.subr.mxu0 %v372
    %444 = vmatpush1.msra.mxu0 %v371
    %445 = vmatprep.subr.mxu0 %v374
    %446 = vmatpush1.msra.mxu0 %v373
    %447 = vmatprep.subr.mxu0 %v376
    %448 = vmatpush1.msra.mxu0 %v375
    %449 = vmatprep.subr.mxu0 %v378
    %450 = vmatpush1.msra.mxu0 %v377
    %451 = vmatprep.subr.mxu0 %v380
    %452 = vmatpush1.msra.mxu0 %v379
    %453 = vmatprep.subr.mxu0 %v382
    %454 = vmatpush1.msra.mxu0 %v381
    %455 = vmatprep.subr.mxu0 %v384
    %456 = vmatpush1.msra.mxu0 %v383
    %457 = vmatprep.subr.mxu0 %v386
    %458 = vmatpush1.msra.mxu0 %v385
    %459 = vmatprep.subr.mxu0 %v388
    %460 = vmatpush1.msra.mxu0 %v387
    %461 = vmatprep.subr.mxu0 %v390
    %462 = vmatpush1.msra.mxu0 %v389
    %463 = vmatprep.subr.mxu0 %v392
    %464 = vmatpush1.msra.mxu0 %v391
    %465 = vmatprep.subr.mxu0 %v394
    %466 = vmatpush1.msra.mxu0 %v393
    %467 = vmatprep.subr.mxu0 %v396
    %468 = vmatpush1.msra.mxu0 %v395
    %469 = vmatprep.subr.mxu0 %v398
    %470 = vmatpush1.msra.mxu0 %v397
    %471 = vmatprep.subr.mxu0 %v400
    %472 = vmatpush1.msra.mxu0 %v399
    %473 = vmatprep.subr.mxu0 %v402
    %474 = vmatpush1.msra.mxu0 %v401
    %475 = vmatprep.subr.mxu0 %v404
    %476 = vmatpush1.msra.mxu0 %v403
    %477 = vmatprep.subr.mxu0 %v406
    %478 = vmatpush1.msra.mxu0 %v405
    %479 = vmatprep.subr.mxu0 %v408
    %480 = vmatpush1.msra.mxu0 %v407
    %481 = vmatprep.subr.mxu0 %v410
    %482 = vmatpush1.msra.mxu0 %v409
    %483 = vmatprep.subr.mxu0 %v412
    %484 = vmatpush1.msra.mxu0 %v411
    %485 = vmatprep.subr.mxu0 %v414
    %486 = vmatpush1.msra.mxu0 %v413
    %487 = vmatprep.subr.mxu0 %v416
    %488 = vmatpush1.msra.mxu0 %v415
    %489 = vmatprep.subr.mxu0 %v418
    %490 = vmatpush1.msra.mxu0 %v417
    %491 = vmatprep.subr.mxu0 %v420
    %492 = vmatpush1.msra.mxu0 %v419
    %493 = vmatprep.subr.mxu0 %v422
    %494 = vmatpush1.msra.mxu0 %v421
    %495 = vmatprep.subr.mxu0 %v424
    %496 = vmatpush1.msra.mxu0 %v423
    %497 = vmatprep.subr.mxu0 %v426
    %498 = vmatpush1.msra.mxu0 %v425
    %499 = vmatprep.subr.mxu0 %v428
    %500 = vmatpush1.msra.mxu0 %v427
    %501 = vmatprep.subr.mxu0 %v430
    %502 = vmatpush1.msra.mxu0 %v429
    %503 = vmatprep.subr.mxu0 %v432
    %504 = vmatpush1.msra.mxu0 %v431
    %505 = vmatprep.mubr.f32.mxu0 %v367
    %506 = vmatmul.mubr.f32.gmra.mrb[0].mxu0 %v366
    %v507 = vpop.f32.mrb[0].mxu0
    %v508 = vadd.f32 %v439, %v507
    %v509 = vpop.f32.mrb[0].mxu0
    %510 = vdwg.mxu0
    %s511 = sld [smem:[#allocation5 + $0x2]]
    %vm512 = vcmp.ge.f32.partialorder %v508, 0.0
    %v513 = vstv %s511
    %v514 = vmul.f32 %v513, %v508
    %v515 = vsel %vm512, %v508, %v514
    %vm516 = vcmask 394240
    %v517 = vsel %vm516, %v515, -inf
    %518 = vmax.xlane.f32.xlu0 %v517
    %v519 = vpop.xlane.xlu0 %518
    %v520 = vsub.f32 %v515, %v519
    %v521 = vmul.f32 %v520, 1.442695
    %v522 = vpow.pop %v521
    %v523 = vsel %vm516, %v522, 0.0
    %524 = vadd.xlane.f32.xlu0 %v523
    %v525 = vpop.xlane.xlu0 %524
    %v526 = vrcp.pop %v525
    %v527 = vmul.f32 %v522, %v526
    %528 = vst.msk [vmem:[%s4] sm:$0x3] %vm516, %v527
    // Predicated region
    $region26: #{xcos_attention.1} parent=1 // pred_check
      _
    $region27: #{xcos_attention.1} parent=1 // pred_check_branch
      %530 = sbr.rel (0) target = $region29
    $region28: #{xcos_attention.1} parent=1 // pred_region
      _
    $region29: #{xcos_attention.1} parent=1 // pred_fallthru
      _
    // Predicated region
    $region30: #{xcos_attention.1} parent=1 // pred_check
      _
    $region31: #{xcos_attention.1} parent=1 // pred_check_branch
      %532 = sbr.rel (0) target = $region33
    $region32: #{xcos_attention.1} parent=1 // pred_region
      _
    $region33: #{xcos_attention.1} parent=1 // pred_fallthru
      _
    %533 = vsyncpa [#allocation3], 1
    %534 = vsyncpa [#allocation4], 1

</llo_original>
